<compile_context>
chip_gen: v7x
topology: tpu7x:2x2x1
jax: 0.10.0
libtpu: 0.0.40
codegen_flags: <defaults>
</compile_context>

<pallas_src>
import functools

import numpy as np
import jax
import jax.numpy as jnp
from jax.experimental import pallas as pl
from jax.experimental.pallas import tpu as pltpu

_HAAR_SCALE = float(2.0 ** -1.5)  # (1/sqrt(2))**3 — the single Haar magnitude


# -----------------------------------------------------------------------------
# Filter construction (mirrors IDWT_3D.__init__ for wave='haar'; used only for
# the numpy reference check — the kernel bakes the butterfly in directly).
# -----------------------------------------------------------------------------
def make_idwt3d_filters(wave: str = "haar") -> np.ndarray:
    if wave != "haar":
        # TODO(synk): only 'haar' reconstruction coefficients are built in-script
        # (no pywt dependency); other wavelets need their rec_lo/rec_hi tables.
        raise NotImplementedError("only 'haar' is supported in this script")
    s = np.float32(1.0 / np.sqrt(2.0))
    rec_lo = np.array([s, s], dtype=np.float32)
    rec_hi = np.array([s, -s], dtype=np.float32)
    combos = [("L", "L", "L"), ("L", "L", "H"), ("L", "H", "L"), ("L", "H", "H"),
              ("H", "L", "L"), ("H", "L", "H"), ("H", "H", "L"), ("H", "H", "H")]
    filts = []
    for c0, c1, c2 in combos:
        fd = rec_lo if c0 == "L" else rec_hi    # kernel depth  (kD) axis
        fh = rec_lo if c1 == "L" else rec_hi    # kernel height (kH) axis
        fw = rec_lo if c2 == "L" else rec_hi    # kernel width  (kW) axis
        filts.append(fd[:, None, None] * fh[None, :, None] * fw[None, None, :])
    return np.stack(filts, axis=0)[:, None]     # (8, 1, 2, 2, 2)


# -----------------------------------------------------------------------------
# Pallas kernel: separable Haar butterfly, 8 sub-bands -> 8 intra-voxel offsets
# -----------------------------------------------------------------------------
def _idwt_haar_kernel(x_ref, o_ref, *, rows, n_chunks):
    # x_ref: (8, tR, lw) f32 VMEM — 8 wavelet sub-bands (c = c0*4 + c1*2 + c2)
    # o_ref: (8, tR, lw) f32 VMEM — 8 offsets           (k = kd*4 + kh*2 + kw)
    def body(j, carry):
        r0 = pl.multiple_of(j * rows, rows)
        sl = pl.ds(r0, rows)
        x0 = x_ref[0, sl, :]; x1 = x_ref[1, sl, :]
        x2 = x_ref[2, sl, :]; x3 = x_ref[3, sl, :]
        x4 = x_ref[4, sl, :]; x5 = x_ref[5, sl, :]
        x6 = x_ref[6, sl, :]; x7 = x_ref[7, sl, :]
        # stage 1 — width (kw) butterfly over the c2 bit
        w00p = x0 + x1; w00m = x0 - x1
        w01p = x2 + x3; w01m = x2 - x3
        w10p = x4 + x5; w10m = x4 - x5
        w11p = x6 + x7; w11m = x6 - x7
        # stage 2 — height (kh) butterfly over the c1 bit
        h00_0 = w00p + w01p; h01_0 = w00p - w01p   # c0=0, kw=0, kh=0/1
        h00_1 = w00m + w01m; h01_1 = w00m - w01m   # c0=0, kw=1
        h10_0 = w10p + w11p; h11_0 = w10p - w11p   # c0=1, kw=0
        h10_1 = w10m + w11m; h11_1 = w10m - w11m   # c0=1, kw=1
        # stage 3 — depth (kd) butterfly over the c0 bit + single scale
        o_ref[0, sl, :] = _HAAR_SCALE * (h00_0 + h10_0)   # kd0 kh0 kw0
        o_ref[1, sl, :] = _HAAR_SCALE * (h00_1 + h10_1)   # kd0 kh0 kw1
        o_ref[2, sl, :] = _HAAR_SCALE * (h01_0 + h11_0)   # kd0 kh1 kw0
        o_ref[3, sl, :] = _HAAR_SCALE * (h01_1 + h11_1)   # kd0 kh1 kw1
        o_ref[4, sl, :] = _HAAR_SCALE * (h00_0 - h10_0)   # kd1 kh0 kw0
        o_ref[5, sl, :] = _HAAR_SCALE * (h00_1 - h10_1)   # kd1 kh0 kw1
        o_ref[6, sl, :] = _HAAR_SCALE * (h01_0 - h11_0)   # kd1 kh1 kw0
        o_ref[7, sl, :] = _HAAR_SCALE * (h01_1 - h11_1)   # kd1 kh1 kw1
        return carry

    jax.lax.fori_loop(0, n_chunks, body, 0, unroll=n_chunks <= 4)


# -----------------------------------------------------------------------------
# Tiling heuristics (byte-budget driven; no "whole array in one block" fallback)
# -----------------------------------------------------------------------------
def _pick_lane_width(L: int, cap: int = 512) -> int:
    """Largest multiple-of-128 divisor of L that is <= cap (lane-dense blocks)."""
    best, t = 0, 128
    while t <= min(L, cap):
        if L % t == 0:
            best = t
        t += 128
    return best if best else L          # odd small L: full-extent lane dim (legal)


def _pick_row_tile(R: int, lw: int, max_block_bytes: int = 2 * 1024 * 1024) -> int:
    """Largest divisor of R that keeps the (8, tR, lw) f32 block under budget and
    is a multiple of 8 (or equals R, which is always a legal block extent)."""
    cap = max(1, max_block_bytes // (8 * lw * 4))
    best = None
    for t in range(1, min(R, cap) + 1):
        if R % t == 0 and (t % 8 == 0 or t == R):
            best = t
    if best is None:
        # TODO(synk): pathological R with no multiple-of-8 divisor under the VMEM
        # budget; fall back to the full extent (still correct, just a big block).
        best = R
    return best


# -----------------------------------------------------------------------------
# Forward pass wrapper
# -----------------------------------------------------------------------------
def idwt_3d_forward(x):
    """x: (B, C, H, W) with C = 8 * D_half.
    Returns (B, 1, 2*D_half, 2*H, 2*W) float32 (matches F.conv_transpose3d, stride=2)."""
    B, C, H, W = x.shape
    assert C % 8 == 0, "channel dim must be 8 * D_half"
    Dh = C // 8
    L = Dh * H * W

    lw = _pick_lane_width(L)            # lane (fast) axis, multiple of 128 when possible
    R = L // lw                         # remaining spatial rows per (batch, sub-band)
    tR = _pick_row_tile(R, lw)
    rows = 8 if (tR % 8 == 0) else tR   # inner-chunk sublane rows (vreg-pressure control)
    n_chunks = tR // rows

    # Free, contiguous reshapes only — no HBM round-trip transpose before the kernel.
    # Row index = b*8 + c (c = sub-band), columns flatten (Dh, H, W) row-major.
    x3 = x.astype(jnp.float32).reshape(B * 8, R, lw)

    kernel = functools.partial(_idwt_haar_kernel, rows=rows, n_chunks=n_chunks)

    y = pl.pallas_call(
        kernel,
        out_shape=jax.ShapeDtypeStruct((B * 8, R, lw), jnp.float32),
        grid=(B, R // tR),
        in_specs=[pl.BlockSpec((8, tR, lw), lambda b, r: (b, r, 0))],
        out_specs=pl.BlockSpec((8, tR, lw), lambda b, r: (b, r, 0)),
        compiler_params=pltpu.CompilerParams(
            dimension_semantics=("parallel", "parallel"),
            vmem_limit_bytes=32 * 1024 * 1024,
        ),
    )(x3)

    # Epilogue: interleave the 8 offsets into the stride-2 output voxel grid.
    # y[b*8 + (kd*4+kh*2+kw), flat(d,h,w)] -> out[b, 0, 2d+kd, 2h+kh, 2w+kw]
    y = y.reshape(B, 2, 2, 2, Dh, H, W)
    y = jnp.transpose(y, (0, 4, 1, 5, 2, 6, 3))        # (B, Dh, kd, H, kh, W, kw)
    return y.reshape(B, 1, 2 * Dh, 2 * H, 2 * W)


class IDWT_3D:
    """JAX/Pallas port of the PyTorch IDWT_3D module (forward only, wave='haar')."""

    def __init__(self, wave: str = "haar"):
        # Filters kept only for parity / reference checks; the kernel bakes the
        # (sign pattern, single scale) of the Haar synthesis filters directly.
        self.filters = jnp.asarray(make_idwt3d_filters(wave))   # (8, 1, 2, 2, 2)

    def __call__(self, x):
        return idwt_3d_forward(x)


if __name__ == "__main__":
    key = jax.random.PRNGKey(0)
    B, C, H, W = 2, 16, 16, 16            # C = 8 * D_half  (D_half = 2)
    x = jax.random.normal(key, (B, C, H, W), dtype=jnp.float32)

    mod = IDWT_3D("haar")
    fwd = jax.jit(lambda a: mod(a))
    out = jax.block_until_ready(fwd(x))

    # pure-numpy reference of F.conv_transpose3d(x.view(B,8,-1,H,W), filters, stride=2)
    Dh = C // 8
    xr_np = np.asarray(x).reshape(B, 8, Dh, H, W)
    f_np = np.asarray(mod.filters).reshape(8, 2, 2, 2)
    blk = np.einsum("bgdhw,gijk->bdhwijk", xr_np, f_np)        # (B,Dh,H,W,kd,kh,kw)
    ref = blk.transpose(0, 1, 4, 2, 5, 3, 6).reshape(B, 1, 2 * Dh, 2 * H, 2 * W)

    assert out.shape == (B, 1, 2 * Dh, 2 * H, 2 * W), out.shape
    np.testing.assert_allclose(np.asarray(out), ref, rtol=1e-5, atol=1e-5)
    print("KERNEL_OK")
</pallas_src>

<mosaic_0001>
module attributes {stable_mosaic.version = 11 : i64} {
  func.func @_idwt_haar_kernel(%arg0: i32, %arg1: i32, %arg2: memref<8x1x512xf32, #tpu.memory_space<vmem>>, %arg3: memref<8x1x512xf32, #tpu.memory_space<vmem>>) attributes {dimension_semantics = [#tpu.dimension_semantics<parallel>, #tpu.dimension_semantics<parallel>], iteration_bounds = array<i64: 2, 1>, scalar_prefetch = 0 : i64, scratch_operands = 0 : i64, tpu.core_type = #tpu.core_type<tc>, window_params = [{transform_indices = @transform_0, window_bounds = array<i64: 8, 1, 512>}, {transform_indices = @transform_1, window_bounds = array<i64: 8, 1, 512>}]} {
    %c0_i32 = arith.constant 0 : i32
    %c1_i32 = arith.constant 1 : i32
    %0 = arith.muli %c0_i32, %c1_i32 : i32
    %1 = tpu.assume_multiple %0, 1 : i32
    %c0 = arith.constant 0 : index
    %2 = arith.index_cast %1 : i32 to index
    %c0_0 = arith.constant 0 : index
    %3 = vector.load %arg2[%c0, %2, %c0_0] : memref<8x1x512xf32, #tpu.memory_space<vmem>>, vector<1x1x512xf32>
    %4 = vector.shape_cast %3 : vector<1x1x512xf32> to vector<1x512xf32>
    %c1 = arith.constant 1 : index
    %5 = arith.index_cast %1 : i32 to index
    %c0_1 = arith.constant 0 : index
    %6 = vector.load %arg2[%c1, %5, %c0_1] : memref<8x1x512xf32, #tpu.memory_space<vmem>>, vector<1x1x512xf32>
    %7 = vector.shape_cast %6 : vector<1x1x512xf32> to vector<1x512xf32>
    %c2 = arith.constant 2 : index
    %8 = arith.index_cast %1 : i32 to index
    %c0_2 = arith.constant 0 : index
    %9 = vector.load %arg2[%c2, %8, %c0_2] : memref<8x1x512xf32, #tpu.memory_space<vmem>>, vector<1x1x512xf32>
    %10 = vector.shape_cast %9 : vector<1x1x512xf32> to vector<1x512xf32>
    %c3 = arith.constant 3 : index
    %11 = arith.index_cast %1 : i32 to index
    %c0_3 = arith.constant 0 : index
    %12 = vector.load %arg2[%c3, %11, %c0_3] : memref<8x1x512xf32, #tpu.memory_space<vmem>>, vector<1x1x512xf32>
    %13 = vector.shape_cast %12 : vector<1x1x512xf32> to vector<1x512xf32>
    %c4 = arith.constant 4 : index
    %14 = arith.index_cast %1 : i32 to index
    %c0_4 = arith.constant 0 : index
    %15 = vector.load %arg2[%c4, %14, %c0_4] : memref<8x1x512xf32, #tpu.memory_space<vmem>>, vector<1x1x512xf32>
    %16 = vector.shape_cast %15 : vector<1x1x512xf32> to vector<1x512xf32>
    %c5 = arith.constant 5 : index
    %17 = arith.index_cast %1 : i32 to index
    %c0_5 = arith.constant 0 : index
    %18 = vector.load %arg2[%c5, %17, %c0_5] : memref<8x1x512xf32, #tpu.memory_space<vmem>>, vector<1x1x512xf32>
    %19 = vector.shape_cast %18 : vector<1x1x512xf32> to vector<1x512xf32>
    %c6 = arith.constant 6 : index
    %20 = arith.index_cast %1 : i32 to index
    %c0_6 = arith.constant 0 : index
    %21 = vector.load %arg2[%c6, %20, %c0_6] : memref<8x1x512xf32, #tpu.memory_space<vmem>>, vector<1x1x512xf32>
    %22 = vector.shape_cast %21 : vector<1x1x512xf32> to vector<1x512xf32>
    %c7 = arith.constant 7 : index
    %23 = arith.index_cast %1 : i32 to index
    %c0_7 = arith.constant 0 : index
    %24 = vector.load %arg2[%c7, %23, %c0_7] : memref<8x1x512xf32, #tpu.memory_space<vmem>>, vector<1x1x512xf32>
    %25 = vector.shape_cast %24 : vector<1x1x512xf32> to vector<1x512xf32>
    %26 = arith.addf %4, %7 : vector<1x512xf32>
    %27 = arith.subf %4, %7 : vector<1x512xf32>
    %28 = arith.addf %10, %13 : vector<1x512xf32>
    %29 = arith.subf %10, %13 : vector<1x512xf32>
    %30 = arith.addf %16, %19 : vector<1x512xf32>
    %31 = arith.subf %16, %19 : vector<1x512xf32>
    %32 = arith.addf %22, %25 : vector<1x512xf32>
    %33 = arith.subf %22, %25 : vector<1x512xf32>
    %34 = arith.addf %26, %28 : vector<1x512xf32>
    %35 = arith.subf %26, %28 : vector<1x512xf32>
    %36 = arith.addf %27, %29 : vector<1x512xf32>
    %37 = arith.subf %27, %29 : vector<1x512xf32>
    %38 = arith.addf %30, %32 : vector<1x512xf32>
    %39 = arith.subf %30, %32 : vector<1x512xf32>
    %40 = arith.addf %31, %33 : vector<1x512xf32>
    %41 = arith.subf %31, %33 : vector<1x512xf32>
    %42 = arith.addf %34, %38 : vector<1x512xf32>
    %cst = arith.constant 0.353553385 : f32
    %43 = vector.broadcast %cst : f32 to vector<1x512xf32>
    %44 = arith.mulf %43, %42 : vector<1x512xf32>
    %c0_8 = arith.constant 0 : index
    %45 = arith.index_cast %1 : i32 to index
    %c0_9 = arith.constant 0 : index
    %46 = vector.load %arg3[%c0_8, %45, %c0_9] : memref<8x1x512xf32, #tpu.memory_space<vmem>>, vector<1x1x512xf32>
    %47 = vector.shape_cast %46 : vector<1x1x512xf32> to vector<1x512xf32>
    %48 = vector.shape_cast %44 : vector<1x512xf32> to vector<1x1x512xf32>
    tpu.vector_store %arg3[%c0_8, %45, %c0_9], %48 {strides = array<i32>} : memref<8x1x512xf32, #tpu.memory_space<vmem>>, vector<1x1x512xf32>,
    %49 = arith.addf %36, %40 : vector<1x512xf32>
    %cst_10 = arith.constant 0.353553385 : f32
    %50 = vector.broadcast %cst_10 : f32 to vector<1x512xf32>
    %51 = arith.mulf %50, %49 : vector<1x512xf32>
    %c1_11 = arith.constant 1 : index
    %52 = arith.index_cast %1 : i32 to index
    %c0_12 = arith.constant 0 : index
    %53 = vector.load %arg3[%c1_11, %52, %c0_12] : memref<8x1x512xf32, #tpu.memory_space<vmem>>, vector<1x1x512xf32>
    %54 = vector.shape_cast %53 : vector<1x1x512xf32> to vector<1x512xf32>
    %55 = vector.shape_cast %51 : vector<1x512xf32> to vector<1x1x512xf32>
    tpu.vector_store %arg3[%c1_11, %52, %c0_12], %55 {strides = array<i32>} : memref<8x1x512xf32, #tpu.memory_space<vmem>>, vector<1x1x512xf32>,
    %56 = arith.addf %35, %39 : vector<1x512xf32>
    %cst_13 = arith.constant 0.353553385 : f32
    %57 = vector.broadcast %cst_13 : f32 to vector<1x512xf32>
    %58 = arith.mulf %57, %56 : vector<1x512xf32>
    %c2_14 = arith.constant 2 : index
    %59 = arith.index_cast %1 : i32 to index
    %c0_15 = arith.constant 0 : index
    %60 = vector.load %arg3[%c2_14, %59, %c0_15] : memref<8x1x512xf32, #tpu.memory_space<vmem>>, vector<1x1x512xf32>
    %61 = vector.shape_cast %60 : vector<1x1x512xf32> to vector<1x512xf32>
    %62 = vector.shape_cast %58 : vector<1x512xf32> to vector<1x1x512xf32>
    tpu.vector_store %arg3[%c2_14, %59, %c0_15], %62 {strides = array<i32>} : memref<8x1x512xf32, #tpu.memory_space<vmem>>, vector<1x1x512xf32>,
    %63 = arith.addf %37, %41 : vector<1x512xf32>
    %cst_16 = arith.constant 0.353553385 : f32
    %64 = vector.broadcast %cst_16 : f32 to vector<1x512xf32>
    %65 = arith.mulf %64, %63 : vector<1x512xf32>
    %c3_17 = arith.constant 3 : index
    %66 = arith.index_cast %1 : i32 to index
    %c0_18 = arith.constant 0 : index
    %67 = vector.load %arg3[%c3_17, %66, %c0_18] : memref<8x1x512xf32, #tpu.memory_space<vmem>>, vector<1x1x512xf32>
    %68 = vector.shape_cast %67 : vector<1x1x512xf32> to vector<1x512xf32>
    %69 = vector.shape_cast %65 : vector<1x512xf32> to vector<1x1x512xf32>
    tpu.vector_store %arg3[%c3_17, %66, %c0_18], %69 {strides = array<i32>} : memref<8x1x512xf32, #tpu.memory_space<vmem>>, vector<1x1x512xf32>,
    %70 = arith.subf %34, %38 : vector<1x512xf32>
    %cst_19 = arith.constant 0.353553385 : f32
    %71 = vector.broadcast %cst_19 : f32 to vector<1x512xf32>
    %72 = arith.mulf %71, %70 : vector<1x512xf32>
    %c4_20 = arith.constant 4 : index
    %73 = arith.index_cast %1 : i32 to index
    %c0_21 = arith.constant 0 : index
    %74 = vector.load %arg3[%c4_20, %73, %c0_21] : memref<8x1x512xf32, #tpu.memory_space<vmem>>, vector<1x1x512xf32>
    %75 = vector.shape_cast %74 : vector<1x1x512xf32> to vector<1x512xf32>
    %76 = vector.shape_cast %72 : vector<1x512xf32> to vector<1x1x512xf32>
    tpu.vector_store %arg3[%c4_20, %73, %c0_21], %76 {strides = array<i32>} : memref<8x1x512xf32, #tpu.memory_space<vmem>>, vector<1x1x512xf32>,
    %77 = arith.subf %36, %40 : vector<1x512xf32>
    %cst_22 = arith.constant 0.353553385 : f32
    %78 = vector.broadcast %cst_22 : f32 to vector<1x512xf32>
    %79 = arith.mulf %78, %77 : vector<1x512xf32>
    %c5_23 = arith.constant 5 : index
    %80 = arith.index_cast %1 : i32 to index
    %c0_24 = arith.constant 0 : index
    %81 = vector.load %arg3[%c5_23, %80, %c0_24] : memref<8x1x512xf32, #tpu.memory_space<vmem>>, vector<1x1x512xf32>
    %82 = vector.shape_cast %81 : vector<1x1x512xf32> to vector<1x512xf32>
    %83 = vector.shape_cast %79 : vector<1x512xf32> to vector<1x1x512xf32>
    tpu.vector_store %arg3[%c5_23, %80, %c0_24], %83 {strides = array<i32>} : memref<8x1x512xf32, #tpu.memory_space<vmem>>, vector<1x1x512xf32>,
    %84 = arith.subf %35, %39 : vector<1x512xf32>
    %cst_25 = arith.constant 0.353553385 : f32
    %85 = vector.broadcast %cst_25 : f32 to vector<1x512xf32>
    %86 = arith.mulf %85, %84 : vector<1x512xf32>
    %c6_26 = arith.constant 6 : index
    %87 = arith.index_cast %1 : i32 to index
    %c0_27 = arith.constant 0 : index
    %88 = vector.load %arg3[%c6_26, %87, %c0_27] : memref<8x1x512xf32, #tpu.memory_space<vmem>>, vector<1x1x512xf32>
    %89 = vector.shape_cast %88 : vector<1x1x512xf32> to vector<1x512xf32>
    %90 = vector.shape_cast %86 : vector<1x512xf32> to vector<1x1x512xf32>
    tpu.vector_store %arg3[%c6_26, %87, %c0_27], %90 {strides = array<i32>} : memref<8x1x512xf32, #tpu.memory_space<vmem>>, vector<1x1x512xf32>,
    %91 = arith.subf %37, %41 : vector<1x512xf32>
    %cst_28 = arith.constant 0.353553385 : f32
    %92 = vector.broadcast %cst_28 : f32 to vector<1x512xf32>
    %93 = arith.mulf %92, %91 : vector<1x512xf32>
    %c7_29 = arith.constant 7 : index
    %94 = arith.index_cast %1 : i32 to index
    %c0_30 = arith.constant 0 : index
    %95 = vector.load %arg3[%c7_29, %94, %c0_30] : memref<8x1x512xf32, #tpu.memory_space<vmem>>, vector<1x1x512xf32>
    %96 = vector.shape_cast %95 : vector<1x1x512xf32> to vector<1x512xf32>
    %97 = vector.shape_cast %93 : vector<1x512xf32> to vector<1x1x512xf32>
    tpu.vector_store %arg3[%c7_29, %94, %c0_30], %97 {strides = array<i32>} : memref<8x1x512xf32, #tpu.memory_space<vmem>>, vector<1x1x512xf32>,
    %c1_i32_31 = arith.constant 1 : i32
    return
  }
  func.func @transform_0(%arg0: i32, %arg1: i32) -> (i32, i32, i32) {
    %c0_i32 = arith.constant 0 : i32
    %c0_i32_0 = arith.constant 0 : i32
    return %arg0, %arg1, %c0_i32 : i32, i32, i32
  }
  func.func @transform_1(%arg0: i32, %arg1: i32) -> (i32, i32, i32) {
    %c0_i32 = arith.constant 0 : i32
    %c0_i32_0 = arith.constant 0 : i32
    return %arg0, %arg1, %c0_i32 : i32, i32, i32
  }
}

</mosaic_0001>

<llo_original>
// kernel: _lambda_.1
$region0: #{_lambda_.1}
  #allocation0 [shape = 'u32[]', space=smem, size = 0x4, offset = 0x4, fixed_abs, tag = 'smem constant byte address 0x4 - core index']
  #allocation1 [shape = 'u32[144,128]{1,0:T(1,128)}', space=vmem, size = 0x12000, scoped, tag = 'internal scratch']
  %s0 = inlined_call_operand.vmem [shape: f32[16,1,512], index: 0, kind: input, shape index: {}]
  %s1 = inlined_call_operand.vmem [shape: f32[16,1,512], index: 1, kind: output, shape index: {}]
  %s2 = sld [smem:[#allocation0]]
  $region37: #{_lambda_.1} parent=0
    _
  %s4 = ssub.s32 1, %s2
  %s5 = scalar_select 0, %s4, %s2
  loop: start=0, step=1, limit=4
  $region2: #{_lambda_.1} parent=0 // loop_pre_header
    _
  $region3: #{_lambda_.1} parent=0 // loop_header
    %s7 = sphi 0, %s11
    %p8 = scmp.ge.s32.totalorder %s7, 4
    %s14 = sphi 0, %s26
    %s15 = sphi 0, %s22
    %s16 = sphi 0, %s14
    %s17 = sphi 0, %s15
    %s18 = sphi 0, %s16
    %s19 = sphi 0, %s17
    %s31 = sphi 0, %s33
    %s34 = sphi 0, %s31
    %s35 = sphi 0, %s34
    %s51 = sphi 0, %s35
    %s59 = sphi 0, %s61
    %s62 = sphi 0, %s59
    %s63 = sphi 0, %s62
    %s79 = sphi 0, %s63
  $region4: #{_lambda_.1} parent=0 // loop_header_branch
    %10 = sbr.rel (%p8) target = $region8
  $region5: #{_lambda_.1} parent=0 // loop_body
    %s12 = ssub.s32 %s7, 1
    %s13 = ssub.s32 %s7, 2
    %s20 = sadd.s32 1, %s15
    %p21 = scmp.ge.s32.totalorder %s20, 1
    %s22 = scalar_select %p21, 0, %s20
    %s23 = sadd.s32 1, %s14
    %s24 = scalar_select %p21, %s23, %s14
    %p25 = scmp.ge.s32.totalorder %s24, 2
    %s26 = scalar_select %p25, 0, %s24
    %s27 = ssub.s32 %s14, %s26
    %s28 = ssub.s32 %s15, %s22
    %s29 = sor.u32 %s27, %s28
    %p30 = scmp.eq.s32.totalorder %s29, 0
    %s32 = sadd.s32 %s31, 1
    %s33 = scalar_select %p30, %s31, %s32
    %p36 = pneg %p30
    %p37 = scmp.eq.s32.totalorder %s7, 1
    %p38 = por %p36, %p37
    %p39 = scmp.ne.s32.totalorder %s31, %s34
    %p40 = scmp.eq.s32.totalorder %s7, 0
    %p41 = por %p39, %p40
    %p42 = scmp.ne.s32.totalorder %s31, %s34
    %p43 = scmp.eq.s32.totalorder %s12, 1
    %p44 = por %p42, %p43
    %p45 = scmp.ne.s32.totalorder %s34, %s35
    %p46 = scmp.eq.s32.totalorder %s12, 0
    %p47 = por %p45, %p46
    %p48 = scmp.ne.s32.totalorder %s34, %s35
    %p49 = scmp.eq.s32.totalorder %s13, 1
    %p50 = por %p48, %p49
    %p52 = scmp.ne.s32.totalorder %s35, %s51
    %p53 = scmp.eq.s32.totalorder %s13, 0
    %p54 = por %p52, %p53
    %s55 = ssub.s32 %s14, %s26
    %s56 = ssub.s32 %s15, %s22
    %s57 = sor.u32 %s55, %s56
    %p58 = scmp.eq.s32.totalorder %s57, 0
    %s60 = sadd.s32 %s59, 1
    %s61 = scalar_select %p58, %s59, %s60
    %p64 = pneg %p58
    %p65 = scmp.eq.s32.totalorder %s7, 1
    %p66 = por %p64, %p65
    %p67 = scmp.ne.s32.totalorder %s59, %s62
    %p68 = scmp.eq.s32.totalorder %s7, 0
    %p69 = por %p67, %p68
    %p70 = scmp.ne.s32.totalorder %s59, %s62
    %p71 = scmp.eq.s32.totalorder %s12, 1
    %p72 = por %p70, %p71
    %p73 = scmp.ne.s32.totalorder %s62, %s63
    %p74 = scmp.eq.s32.totalorder %s12, 0
    %p75 = por %p73, %p74
    %p76 = scmp.ne.s32.totalorder %s62, %s63
    %p77 = scmp.eq.s32.totalorder %s13, 1
    %p78 = por %p76, %p77
    %p80 = scmp.ne.s32.totalorder %s63, %s79
    %p81 = scmp.eq.s32.totalorder %s13, 0
    %p82 = por %p80, %p81
    %p83 = scmp.le.s32.totalorder 1, %s7
    %p84 = scmp.lt.s32.totalorder %s7, 3
    %p85 = pnand %p83, %p84
    %p86 = pneg %p85
    // Predicated region
    $region9: #{_lambda_.1} parent=5 // pred_check
      _
    $region10: #{_lambda_.1} parent=5 // pred_check_branch
      %88 = sbr.rel (%p85) target = $region12
    $region11: #{_lambda_.1} parent=5 // pred_region
      %s89 = ssub.s32 %s7, 1
    $region12: #{_lambda_.1} parent=5 // pred_fallthru
      _
    %p90 = scmp.lt.s32.totalorder %s7, 2
    // Predicated region
    $region13: #{_lambda_.1} parent=5 // pred_check
      %p91 = pneg %p90
    $region14: #{_lambda_.1} parent=5 // pred_check_branch
      %93 = sbr.rel (%p91) target = $region16
    $region15: #{_lambda_.1} parent=5 // pred_region
      // Predicated region
      $region17: #{_lambda_.1} parent=15 // pred_check
        %p94 = pneg %p41
      $region18: #{_lambda_.1} parent=15 // pred_check_branch
        %96 = sbr.rel (%p94) target = $region20
      $region19: #{_lambda_.1} parent=15 // pred_region
        %s97 = smul.u32 8, %s14
        %p98 = scmp.lt.s32.totalorder %s97, 15
        %s99 = scalar_select %p98, %s97, 15
        %p100 = scmp.lt.s32.totalorder %s15, 0
        %s101 = scalar_select %p100, %s15, 0
        %s102 = smul.addr %s101, 4
        %s103 = smul.addr %s99, 4
        %s104 = sadd.s32 %s102, %s103
        %s105 = scalar_lea.vmem %s0, %s104
        %s106 = smul.u32 8, %s14
      $region20: #{_lambda_.1} parent=15 // pred_fallthru
        _
    $region16: #{_lambda_.1} parent=5 // pred_fallthru
      _
    %p107 = scmp.le.s32.totalorder 1, %s7
    %p108 = scmp.lt.s32.totalorder %s7, 3
    %p109 = pnand %p107, %p108
    %p110 = pneg %p109
    // Predicated region
    $region21: #{_lambda_.1} parent=5 // pred_check
      _
    $region22: #{_lambda_.1} parent=5 // pred_check_branch
      %112 = sbr.rel (%p109) target = $region24
    $region23: #{_lambda_.1} parent=5 // pred_region
      %s113 = ssub.s32 %s7, 1
      %s114 = smul.u32 8, %s16
      %p115 = scmp.lt.s32.totalorder %s114, 15
      %s116 = scalar_select %p115, %s114, 15
      %p117 = scmp.lt.s32.totalorder %s17, 0
      %s118 = scalar_select %p117, %s17, 0
      %s119 = smul.addr %s118, 4
      %s120 = smul.addr %s116, 4
      %s121 = sadd.s32 %s119, %s120
      %s122 = scalar_lea.vmem %s0, %s121
      %p123 = pneg %p47
      %p124 = pneg %p44
      %p125 = pneg %p75
      %p126 = pneg %p72
      %s127 = smul.u32 8, %s16
      %p128 = scmp.lt.s32.totalorder %s127, 15
      %s129 = scalar_select %p128, %s127, 15
      %p130 = scmp.lt.s32.totalorder %s17, 0
      %s131 = scalar_select %p130, %s17, 0
      %s132 = smul.addr %s131, 4
      %s133 = smul.addr %s129, 4
      %s134 = sadd.s32 %s132, %s133
      %s135 = scalar_lea.vmem %s1, %s134
      %s136 = smul.u32 8, %s16
      %p137 = scmp.lt.s32.totalorder %s136, 15
      %s138 = scalar_select %p137, %s136, 15
      %p139 = scmp.lt.s32.totalorder %s17, 0
      %s140 = scalar_select %p139, %s17, 0
      %s141 = smul.addr %s140, 4
      %s142 = smul.addr %s138, 4
      %s143 = sadd.s32 %s141, %s142
      %s144 = scalar_lea.vmem %s0, %s143
      %s145 = smul.u32 8, %s16
      %s146 = smul.u32 8, %s16
      %p147 = scmp.lt.s32.totalorder %s146, 15
      %s148 = scalar_select %p147, %s146, 15
      %p149 = scmp.lt.s32.totalorder %s17, 0
      %s150 = scalar_select %p149, %s17, 0
      %s151 = smul.addr %s150, 4
      %s152 = smul.addr %s148, 4
      %s153 = sadd.s32 %s151, %s152
      %s154 = scalar_lea.vmem %s1, %s153
      %s155 = smul.u32 8, %s16
      %s156 = smul.u32 0, 4
      %s157 = scalar_lea.vmem %s144, %s156
      %v158 = vld [vmem:[%s157] sm:$0xf]
      %s159 = sadd.s32 %s156, 4
      %s160 = scalar_lea.vmem %s144, %s159
      %v161 = vld [vmem:[%s160] sm:$0xf]
      %s162 = sadd.s32 %s156, 8
      %s163 = scalar_lea.vmem %s144, %s162
      %v164 = vld [vmem:[%s163] sm:$0xf]
      %s165 = sadd.s32 %s156, 12
      %s166 = scalar_lea.vmem %s144, %s165
      %v167 = vld [vmem:[%s166] sm:$0xf]
      %s168 = sadd.s32 %s156, 16
      %s169 = scalar_lea.vmem %s144, %s168
      %v170 = vld [vmem:[%s169] sm:$0xf]
      %s171 = sadd.s32 %s156, 20
      %s172 = scalar_lea.vmem %s144, %s171
      %v173 = vld [vmem:[%s172] sm:$0xf]
      %s174 = sadd.s32 %s156, 24
      %s175 = scalar_lea.vmem %s144, %s174
      %v176 = vld [vmem:[%s175] sm:$0xf]
      %s177 = sadd.s32 %s156, 28
      %s178 = scalar_lea.vmem %s144, %s177
      %v179 = vld [vmem:[%s178] sm:$0xf]
      %v180 = vadd.f32 %v158, %v161
      %v181 = vsub.f32 %v158, %v161
      %v182 = vadd.f32 %v164, %v167
      %v183 = vsub.f32 %v164, %v167
      %v184 = vadd.f32 %v170, %v173
      %v185 = vsub.f32 %v170, %v173
      %v186 = vadd.f32 %v176, %v179
      %v187 = vsub.f32 %v176, %v179
      %v188 = vadd.f32 %v180, %v182
      %v189 = vsub.f32 %v180, %v182
      %v190 = vadd.f32 %v181, %v183
      %v191 = vsub.f32 %v181, %v183
      %v192 = vadd.f32 %v184, %v186
      %v193 = vsub.f32 %v184, %v186
      %v194 = vadd.f32 %v185, %v187
      %v195 = vsub.f32 %v185, %v187
      %v196 = vadd.f32 %v188, %v192
      %v197 = vmul.f32 %v196, 0.35355338
      %s198 = scalar_lea.vmem %s154, %s156
      %v199 = vlaneseq
      %vm200 = vcmp.ge.s32.totalorder %v199, 0
      %vm201 = vcmp.lt.s32.totalorder %v199, 512
      %vm202 = vmand %vm200, %vm201
      %203 = vst.msk [vmem:[%s198] sm:$0xf] %vm202, %v197
      %v204 = vadd.f32 %v190, %v194
      %v205 = vmul.f32 %v204, 0.35355338
      %s206 = scalar_lea.vmem %s154, %s159
      %207 = vst.msk [vmem:[%s206] sm:$0xf] %vm202, %v205
      %v208 = vadd.f32 %v189, %v193
      %v209 = vmul.f32 %v208, 0.35355338
      %s210 = scalar_lea.vmem %s154, %s162
      %211 = vst.msk [vmem:[%s210] sm:$0xf] %vm202, %v209
      %v212 = vadd.f32 %v191, %v195
      %v213 = vmul.f32 %v212, 0.35355338
      %s214 = scalar_lea.vmem %s154, %s165
      %215 = vst.msk [vmem:[%s214] sm:$0xf] %vm202, %v213
      %v216 = vsub.f32 %v188, %v192
      %v217 = vmul.f32 %v216, 0.35355338
      %s218 = scalar_lea.vmem %s154, %s168
      %219 = vst.msk [vmem:[%s218] sm:$0xf] %vm202, %v217
      %v220 = vsub.f32 %v190, %v194
      %v221 = vmul.f32 %v220, 0.35355338
      %s222 = scalar_lea.vmem %s154, %s171
      %223 = vst.msk [vmem:[%s222] sm:$0xf] %vm202, %v221
      %v224 = vsub.f32 %v189, %v193
      %v225 = vmul.f32 %v224, 0.35355338
      %s226 = scalar_lea.vmem %s154, %s174
      %227 = vst.msk [vmem:[%s226] sm:$0xf] %vm202, %v225
      %v228 = vsub.f32 %v191, %v195
      %v229 = vmul.f32 %v228, 0.35355338
      %s230 = scalar_lea.vmem %s154, %s177
      %231 = vst.msk [vmem:[%s230] sm:$0xf] %vm202, %v229
      %s232 = smul.u32 8, %s16
      %p233 = scmp.lt.s32.totalorder %s232, 15
      %s234 = scalar_select %p233, %s232, 15
      %p235 = scmp.lt.s32.totalorder %s17, 0
      %s236 = scalar_select %p235, %s17, 0
      %s237 = smul.addr %s236, 4
      %s238 = smul.addr %s234, 4
      %s239 = sadd.s32 %s237, %s238
      %s240 = scalar_lea.vmem %s1, %s239
      // Predicated region
      $region25: #{_lambda_.1} parent=23 // pred_check
        %p241 = pneg %p72
      $region26: #{_lambda_.1} parent=23 // pred_check_branch
        %243 = sbr.rel (%p241) target = $region28
      $region27: #{_lambda_.1} parent=23 // pred_region
        %s244 = smul.u32 8, %s16
      $region28: #{_lambda_.1} parent=23 // pred_fallthru
        _
    $region24: #{_lambda_.1} parent=5 // pred_fallthru
      _
    %p245 = scmp.le.s32.totalorder 2, %s7
    // Predicated region
    $region29: #{_lambda_.1} parent=5 // pred_check
      %p246 = pneg %p245
    $region30: #{_lambda_.1} parent=5 // pred_check_branch
      %248 = sbr.rel (%p246) target = $region32
    $region31: #{_lambda_.1} parent=5 // pred_region
      %s249 = ssub.s32 %s7, 2
      // Predicated region
      $region33: #{_lambda_.1} parent=31 // pred_check
        %p250 = pneg %p78
      $region34: #{_lambda_.1} parent=31 // pred_check_branch
        %252 = sbr.rel (%p250) target = $region36
      $region35: #{_lambda_.1} parent=31 // pred_region
        %s253 = smul.u32 8, %s18
        %p254 = scmp.lt.s32.totalorder %s253, 15
        %s255 = scalar_select %p254, %s253, 15
        %p256 = scmp.lt.s32.totalorder %s19, 0
        %s257 = scalar_select %p256, %s19, 0
        %s258 = smul.addr %s257, 4
        %s259 = smul.addr %s255, 4
        %s260 = sadd.s32 %s258, %s259
        %s261 = scalar_lea.vmem %s1, %s260
      $region36: #{_lambda_.1} parent=31 // pred_fallthru
        _
    $region32: #{_lambda_.1} parent=5 // pred_fallthru
      _
  $region6: #{_lambda_.1} parent=0 // loop_footer
    %s11 = sadd.s32 1, %s7
  $region7: #{_lambda_.1} parent=0 // loop_footer_branch
    %6 = sbr.rel target = $region3
  $region8: #{_lambda_.1} parent=0 // loop_exit
    _

</llo_original>
